<compile_context>
chip_gen: v6e
topology: v6e:2x2x1
jax: 0.10.0
libtpu: 0.0.40
codegen_flags: <defaults>
</compile_context>

<pallas_src>
import jax
import jax.numpy as jnp
import numpy as np
from jax.experimental import pallas as pl
from jax.experimental.pallas import tpu as pltpu

# ---------------- configuration -------------------------------------------------------------
B = 2                      # batch
F = 64                     # filterbank / frequency bins (sublane axis)
T = 128                    # frames (lane axis; 128 => lane-dense, unmasked stores)
FREQ_MASK_WIDTH = (0, 8)   # module defaults
TIME_MASK_WIDTH = (0, 10)


# ---------------- Pallas kernel --------------------------------------------------------------
def specaug_kernel(bounds_ref, x_ref, out_ref):
    """bounds_ref: SMEM int32 [B, 4] = (t_pos, t_len, f_pos, f_len) per batch element.
       x_ref / out_ref: VMEM float32 [B, F, T]."""
    b_, f_, t_ = x_ref.shape
    # frequency index per sublane row, time index per lane column
    f_iota = jax.lax.broadcasted_iota(jnp.int32, (f_, t_), 0)
    t_iota = jax.lax.broadcasted_iota(jnp.int32, (f_, t_), 1)

    for b in range(b_):                       # tiny static unroll: pure VPU work per slice
        t_pos = bounds_ref[b, 0]
        t_len = bounds_ref[b, 1]
        f_pos = bounds_ref[b, 2]
        f_len = bounds_ref[b, 3]
        time_mask = (t_iota >= t_pos) & (t_iota < t_pos + t_len)
        freq_mask = (f_iota >= f_pos) & (f_iota < f_pos + f_len)
        out_ref[b] = jnp.where(time_mask | freq_mask, 0.0, x_ref[b]).astype(out_ref.dtype)


def filterbank_augment(x, bounds):
    """x: [B, F, T] float, bounds: [B, 4] int32 (t_pos, t_len, f_pos, f_len)."""
    return pl.pallas_call(
        specaug_kernel,
        out_shape=jax.ShapeDtypeStruct(x.shape, x.dtype),
        in_specs=[pl.BlockSpec(memory_space=pltpu.MemorySpace.SMEM),   # packed mask scalars
                  pl.BlockSpec(memory_space=pltpu.MemorySpace.VMEM)],  # whole input block
        out_specs=pl.BlockSpec(memory_space=pltpu.MemorySpace.VMEM),
    )(bounds, x)


# ---------------- random mask-parameter sampling (mirrors torch.randint draws) ---------------
def sample_mask_bounds(key, batch, n_freq, n_time,
                       freq_mask_width=FREQ_MASK_WIDTH, time_mask_width=TIME_MASK_WIDTH):
    """Replicates FilterBankAUGMENT's draws: time mask (dim=2) first, then freq mask (dim=1).
    Note the torch code bounds mask_pos by D - mask_len.max() over the batch."""
    k_tl, k_tp, k_fl, k_fp = jax.random.split(key, 4)
    t_len = jax.random.randint(k_tl, (batch,), time_mask_width[0], time_mask_width[1])
    t_pos = jax.random.randint(k_tp, (batch,), 0, jnp.maximum(1, n_time - jnp.max(t_len)))
    f_len = jax.random.randint(k_fl, (batch,), freq_mask_width[0], freq_mask_width[1])
    f_pos = jax.random.randint(k_fp, (batch,), 0, jnp.maximum(1, n_freq - jnp.max(f_len)))
    return jnp.stack([t_pos, t_len, f_pos, f_len], axis=1).astype(jnp.int32)


# ---------------- plain-JAX reference (exact check) ------------------------------------------
def ref_forward(x, bounds):
    batch, n_freq, n_time = x.shape
    t_pos = bounds[:, 0][:, None, None]
    t_len = bounds[:, 1][:, None, None]
    f_pos = bounds[:, 2][:, None, None]
    f_len = bounds[:, 3][:, None, None]
    t_ar = jnp.arange(n_time)[None, None, :]
    f_ar = jnp.arange(n_freq)[None, :, None]
    time_mask = (t_ar >= t_pos) & (t_ar < t_pos + t_len)
    freq_mask = (f_ar >= f_pos) & (f_ar < f_pos + f_len)
    return jnp.where(time_mask | freq_mask, 0.0, x)


# ---------------- main ------------------------------------------------------------------------
if __name__ == "__main__":
    key = jax.random.PRNGKey(0)
    kx, km = jax.random.split(key)
    x = jax.random.normal(kx, (B, F, T), jnp.float32)
    bounds = sample_mask_bounds(km, B, F, T)

    out = filterbank_augment(x, bounds)
    out = jax.block_until_ready(out)

    ref = ref_forward(x, bounds)
    np.testing.assert_allclose(np.asarray(out), np.asarray(ref), rtol=0, atol=0)
    print("KERNEL_OK")
</pallas_src>

<mosaic_0001>
module attributes {stable_mosaic.version = 11 : i64} {
  func.func @specaug_kernel(%arg0: memref<2x4xi32, #tpu.memory_space<smem>>, %arg1: memref<2x64x128xf32, #tpu.memory_space<vmem>>, %arg2: memref<2x64x128xf32, #tpu.memory_space<vmem>>) attributes {dimension_semantics = [], scalar_prefetch = 0 : i64, scratch_operands = 0 : i64, tpu.core_type = #tpu.core_type<tc>} {
    %0 = tpu.iota {dimensions = array<i32: 0>} : vector<64x128xi32>
    %1 = tpu.iota {dimensions = array<i32: 1>} : vector<64x128xi32>
    %c0 = arith.constant 0 : index
    %c0_0 = arith.constant 0 : index
    %2 = memref.load %arg0[%c0, %c0_0] : memref<2x4xi32, #tpu.memory_space<smem>>
    %c0_1 = arith.constant 0 : index
    %c1 = arith.constant 1 : index
    %3 = memref.load %arg0[%c0_1, %c1] : memref<2x4xi32, #tpu.memory_space<smem>>
    %c0_2 = arith.constant 0 : index
    %c2 = arith.constant 2 : index
    %4 = memref.load %arg0[%c0_2, %c2] : memref<2x4xi32, #tpu.memory_space<smem>>
    %c0_3 = arith.constant 0 : index
    %c3 = arith.constant 3 : index
    %5 = memref.load %arg0[%c0_3, %c3] : memref<2x4xi32, #tpu.memory_space<smem>>
    %6 = vector.broadcast %2 : i32 to vector<64x128xi32>
    %7 = arith.cmpi sge, %1, %6 : vector<64x128xi32>
    %8 = arith.addi %2, %3 : i32
    %9 = vector.broadcast %8 : i32 to vector<64x128xi32>
    %10 = arith.cmpi slt, %1, %9 : vector<64x128xi32>
    %11 = arith.andi %7, %10 : vector<64x128xi1>
    %12 = vector.broadcast %4 : i32 to vector<64x128xi32>
    %13 = arith.cmpi sge, %0, %12 : vector<64x128xi32>
    %14 = arith.addi %4, %5 : i32
    %15 = vector.broadcast %14 : i32 to vector<64x128xi32>
    %16 = arith.cmpi slt, %0, %15 : vector<64x128xi32>
    %17 = arith.andi %13, %16 : vector<64x128xi1>
    %18 = arith.ori %11, %17 : vector<64x128xi1>
    %c0_4 = arith.constant 0 : index
    %c0_5 = arith.constant 0 : index
    %c0_6 = arith.constant 0 : index
    %19 = vector.load %arg1[%c0_4, %c0_5, %c0_6] : memref<2x64x128xf32, #tpu.memory_space<vmem>>, vector<1x64x128xf32>
    %20 = vector.shape_cast %19 : vector<1x64x128xf32> to vector<64x128xf32>
    %cst = arith.constant 0.000000e+00 : f32
    %21 = vector.broadcast %cst : f32 to vector<64x128xf32>
    %22 = arith.select %18, %21, %20 : vector<64x128xi1>, vector<64x128xf32>
    %c0_7 = arith.constant 0 : index
    %c0_8 = arith.constant 0 : index
    %c0_9 = arith.constant 0 : index
    %23 = vector.load %arg2[%c0_7, %c0_8, %c0_9] : memref<2x64x128xf32, #tpu.memory_space<vmem>>, vector<1x64x128xf32>
    %24 = vector.shape_cast %23 : vector<1x64x128xf32> to vector<64x128xf32>
    %25 = vector.shape_cast %22 : vector<64x128xf32> to vector<1x64x128xf32>
    tpu.vector_store %arg2[%c0_7, %c0_8, %c0_9], %25 {strides = array<i32>} : memref<2x64x128xf32, #tpu.memory_space<vmem>>, vector<1x64x128xf32>,
    %c1_10 = arith.constant 1 : index
    %c0_11 = arith.constant 0 : index
    %26 = memref.load %arg0[%c1_10, %c0_11] : memref<2x4xi32, #tpu.memory_space<smem>>
    %c1_12 = arith.constant 1 : index
    %c1_13 = arith.constant 1 : index
    %27 = memref.load %arg0[%c1_12, %c1_13] : memref<2x4xi32, #tpu.memory_space<smem>>
    %c1_14 = arith.constant 1 : index
    %c2_15 = arith.constant 2 : index
    %28 = memref.load %arg0[%c1_14, %c2_15] : memref<2x4xi32, #tpu.memory_space<smem>>
    %c1_16 = arith.constant 1 : index
    %c3_17 = arith.constant 3 : index
    %29 = memref.load %arg0[%c1_16, %c3_17] : memref<2x4xi32, #tpu.memory_space<smem>>
    %30 = vector.broadcast %26 : i32 to vector<64x128xi32>
    %31 = arith.cmpi sge, %1, %30 : vector<64x128xi32>
    %32 = arith.addi %26, %27 : i32
    %33 = vector.broadcast %32 : i32 to vector<64x128xi32>
    %34 = arith.cmpi slt, %1, %33 : vector<64x128xi32>
    %35 = arith.andi %31, %34 : vector<64x128xi1>
    %36 = vector.broadcast %28 : i32 to vector<64x128xi32>
    %37 = arith.cmpi sge, %0, %36 : vector<64x128xi32>
    %38 = arith.addi %28, %29 : i32
    %39 = vector.broadcast %38 : i32 to vector<64x128xi32>
    %40 = arith.cmpi slt, %0, %39 : vector<64x128xi32>
    %41 = arith.andi %37, %40 : vector<64x128xi1>
    %42 = arith.ori %35, %41 : vector<64x128xi1>
    %c1_18 = arith.constant 1 : index
    %c0_19 = arith.constant 0 : index
    %c0_20 = arith.constant 0 : index
    %43 = vector.load %arg1[%c1_18, %c0_19, %c0_20] : memref<2x64x128xf32, #tpu.memory_space<vmem>>, vector<1x64x128xf32>
    %44 = vector.shape_cast %43 : vector<1x64x128xf32> to vector<64x128xf32>
    %cst_21 = arith.constant 0.000000e+00 : f32
    %45 = vector.broadcast %cst_21 : f32 to vector<64x128xf32>
    %46 = arith.select %42, %45, %44 : vector<64x128xi1>, vector<64x128xf32>
    %c1_22 = arith.constant 1 : index
    %c0_23 = arith.constant 0 : index
    %c0_24 = arith.constant 0 : index
    %47 = vector.load %arg2[%c1_22, %c0_23, %c0_24] : memref<2x64x128xf32, #tpu.memory_space<vmem>>, vector<1x64x128xf32>
    %48 = vector.shape_cast %47 : vector<1x64x128xf32> to vector<64x128xf32>
    %49 = vector.shape_cast %46 : vector<64x128xf32> to vector<1x64x128xf32>
    tpu.vector_store %arg2[%c1_22, %c0_23, %c0_24], %49 {strides = array<i32>} : memref<2x64x128xf32, #tpu.memory_space<vmem>>, vector<1x64x128xf32>,
    return
  }
}

</mosaic_0001>

<llo_original>
// kernel: tpu_custom_call.1
$region0: #{tpu_custom_call.1}
  #allocation0 [shape = 'u32[]', space=smem, size = 0x4, offset = 0x4, fixed_abs, tag = 'smem constant byte address 0x4 - core index']
  #allocation1 [shape = 'u32[144,128]{1,0:T(1,128)}', space=vmem, size = 0x12000, scoped, tag = 'internal scratch']
  %s0 = inlined_call_operand.hbm [shape: s32[2,4], index: 0, kind: input, shape index: {}]
  %s1 = inlined_call_operand.hbm [shape: f32[2,64,128], index: 1, kind: input, shape index: {}]
  %s2 = inlined_call_operand.hbm [shape: f32[2,64,128], index: 2, kind: output, shape index: {}]
  %s3 = sld [smem:[#allocation0]]
  $region26: #{tpu_custom_call.1} parent=0
    _
  %s5 = ssub.s32 1, %s3
  %s6 = scalar_select 0, %s5, %s3
  $region1: #{tpu_custom_call.1} parent=0
    #allocation2 [shape = 'u8[1024]{0}', space=smem, size = 0x400, scoped, tag = 'input window, operand 0, single buffered']
    #allocation3 [shape = 's32[1]{0}', space=sflag, size = 0x4, scoped, tag = 'scoped memory for tpu_custom_call.1']
    #allocation4 [shape = 's32[1]{0}', space=sflag, size = 0x4, scoped, tag = 'scoped memory for tpu_custom_call.1']
    #allocation5 [shape = 's32[1]{0}', space=sflag, size = 0x4, scoped, tag = 'scoped memory for tpu_custom_call.1']
    #allocation6 [shape = 'u8[65536]{0}', space=vmem, size = 0x10000, scoped, tag = 'input window, operand 1, single buffered']
    #allocation7 [shape = 'u8[65536]{0}', space=vmem, size = 0x10000, scoped, tag = 'output window, operand 0, single buffered']
    %7 = vsyncpa [#allocation5], 0
    %8 = vsyncpa [#allocation3], 0
    %9 = vsyncpa [#allocation4], 0
    // Predicated region
    $region2: #{tpu_custom_call.1} parent=1 // pred_check
      _
    $region3: #{tpu_custom_call.1} parent=1 // pred_check_branch
      %11 = sbr.rel (0) target = $region5
    $region4: #{tpu_custom_call.1} parent=1 // pred_region
      %s13 = ssub.s32 32, 32
      %14 = vsyncadd [#allocation5], %s13
      %17 = dma.hbm_to_smem %s0, 32, [#allocation2], [#allocation5]
    $region5: #{tpu_custom_call.1} parent=1 // pred_fallthru
      _
    // Predicated region
    $region6: #{tpu_custom_call.1} parent=1 // pred_check
      _
    $region7: #{tpu_custom_call.1} parent=1 // pred_check_branch
      %19 = sbr.rel (0) target = $region9
    $region8: #{tpu_custom_call.1} parent=1 // pred_region
      %s21 = ssub.s32 2048, 2048
      %22 = vsyncadd [#allocation3], %s21
      %s23 = sshll.u32 [#allocation6], 4
      %s24 = int_to_ptr.vmem [resolvable:$true] %s23
      %29 = dma.hbm_to_vmem [thread:$0]  %s1, 2048, %s24, [#allocation3], 128, 128, 8
    $region9: #{tpu_custom_call.1} parent=1 // pred_fallthru
      _
    // Predicated region
    $region10: #{tpu_custom_call.1} parent=1 // pred_check
      _
    $region11: #{tpu_custom_call.1} parent=1 // pred_check_branch
      %31 = sbr.rel (0) target = $region13
    $region12: #{tpu_custom_call.1} parent=1 // pred_region
      %32 = dma.done [#allocation5], 32
    $region13: #{tpu_custom_call.1} parent=1 // pred_fallthru
      _
    // Predicated region
    $region14: #{tpu_custom_call.1} parent=1 // pred_check
      _
    $region15: #{tpu_custom_call.1} parent=1 // pred_check_branch
      %34 = sbr.rel (0) target = $region17
    $region16: #{tpu_custom_call.1} parent=1 // pred_region
      %35 = dma.done [#allocation3], 2048
    $region17: #{tpu_custom_call.1} parent=1 // pred_fallthru
      _
    %36 = sfence
    %v37 = vlaneseq
    %v38 = vshrl.u32 %v37, 7
    %v39 = vadd.s32 %v38, 8
    %v40 = vadd.s32 %v38, 16
    %v41 = vadd.s32 %v38, 24
    %v42 = vadd.s32 %v38, 32
    %v43 = vadd.s32 %v38, 40
    %v44 = vadd.s32 %v38, 48
    %v45 = vadd.s32 %v38, 56
    %v46 = vlaneseq
    %v47 = vand.u32 %v46, 127
    %s48 = sld [smem:[#allocation2]]
    %s49 = sld [smem:[#allocation2 + $0x1]]
    %s50 = sld [smem:[#allocation2 + $0x2]]
    %s51 = sld [smem:[#allocation2 + $0x3]]
    %v52 = vstv %s48
    %vm53 = vcmp.ge.s32.totalorder %v47, %v52
    %s54 = sadd.s32 %s48, %s49
    %v55 = vstv %s54
    %vm56 = vcmp.lt.s32.totalorder %v47, %v55
    %vm57 = vmand %vm53, %vm56
    %v58 = vstv %s50
    %vm59 = vcmp.ge.s32.totalorder %v38, %v58
    %vm60 = vcmp.ge.s32.totalorder %v39, %v58
    %vm61 = vcmp.ge.s32.totalorder %v40, %v58
    %vm62 = vcmp.ge.s32.totalorder %v41, %v58
    %vm63 = vcmp.ge.s32.totalorder %v42, %v58
    %vm64 = vcmp.ge.s32.totalorder %v43, %v58
    %vm65 = vcmp.ge.s32.totalorder %v44, %v58
    %vm66 = vcmp.ge.s32.totalorder %v45, %v58
    %s67 = sadd.s32 %s50, %s51
    %v68 = vstv %s67
    %vm69 = vcmp.lt.s32.totalorder %v38, %v68
    %vm70 = vcmp.lt.s32.totalorder %v39, %v68
    %vm71 = vcmp.lt.s32.totalorder %v40, %v68
    %vm72 = vcmp.lt.s32.totalorder %v41, %v68
    %vm73 = vcmp.lt.s32.totalorder %v42, %v68
    %vm74 = vcmp.lt.s32.totalorder %v43, %v68
    %vm75 = vcmp.lt.s32.totalorder %v44, %v68
    %vm76 = vcmp.lt.s32.totalorder %v45, %v68
    %vm77 = vmand %vm59, %vm69
    %vm78 = vmand %vm60, %vm70
    %vm79 = vmand %vm61, %vm71
    %vm80 = vmand %vm62, %vm72
    %vm81 = vmand %vm63, %vm73
    %vm82 = vmand %vm64, %vm74
    %vm83 = vmand %vm65, %vm75
    %vm84 = vmand %vm66, %vm76
    %vm85 = vmor %vm57, %vm77
    %vm86 = vmor %vm57, %vm78
    %vm87 = vmor %vm57, %vm79
    %vm88 = vmor %vm57, %vm80
    %vm89 = vmor %vm57, %vm81
    %vm90 = vmor %vm57, %vm82
    %vm91 = vmor %vm57, %vm83
    %vm92 = vmor %vm57, %vm84
    %v93 = vld [vmem:[#allocation6] sm:$0xff]
    %v94 = vld [vmem:[#allocation6 + $0x8] sm:$0xff]
    %v95 = vld [vmem:[#allocation6 + $0x10] sm:$0xff]
    %v96 = vld [vmem:[#allocation6 + $0x18] sm:$0xff]
    %v97 = vld [vmem:[#allocation6 + $0x20] sm:$0xff]
    %v98 = vld [vmem:[#allocation6 + $0x28] sm:$0xff]
    %v99 = vld [vmem:[#allocation6 + $0x30] sm:$0xff]
    %v100 = vld [vmem:[#allocation6 + $0x38] sm:$0xff]
    %v101 = vsel %vm85, 0.0, %v93
    %v102 = vsel %vm86, 0.0, %v94
    %v103 = vsel %vm87, 0.0, %v95
    %v104 = vsel %vm88, 0.0, %v96
    %v105 = vsel %vm89, 0.0, %v97
    %v106 = vsel %vm90, 0.0, %v98
    %v107 = vsel %vm91, 0.0, %v99
    %v108 = vsel %vm92, 0.0, %v100
    %109 = vst [vmem:[#allocation7] sm:$0xff] %v101
    %110 = vst [vmem:[#allocation7 + $0x8] sm:$0xff] %v102
    %111 = vst [vmem:[#allocation7 + $0x10] sm:$0xff] %v103
    %112 = vst [vmem:[#allocation7 + $0x18] sm:$0xff] %v104
    %113 = vst [vmem:[#allocation7 + $0x20] sm:$0xff] %v105
    %114 = vst [vmem:[#allocation7 + $0x28] sm:$0xff] %v106
    %115 = vst [vmem:[#allocation7 + $0x30] sm:$0xff] %v107
    %116 = vst [vmem:[#allocation7 + $0x38] sm:$0xff] %v108
    %s117 = sld [smem:[#allocation2 + $0x80]]
    %s118 = sld [smem:[#allocation2 + $0x81]]
    %s119 = sld [smem:[#allocation2 + $0x82]]
    %s120 = sld [smem:[#allocation2 + $0x83]]
    %v121 = vstv %s117
    %vm122 = vcmp.ge.s32.totalorder %v47, %v121
    %s123 = sadd.s32 %s117, %s118
    %v124 = vstv %s123
    %vm125 = vcmp.lt.s32.totalorder %v47, %v124
    %vm126 = vmand %vm122, %vm125
    %v127 = vstv %s119
    %vm128 = vcmp.ge.s32.totalorder %v38, %v127
    %vm129 = vcmp.ge.s32.totalorder %v39, %v127
    %vm130 = vcmp.ge.s32.totalorder %v40, %v127
    %vm131 = vcmp.ge.s32.totalorder %v41, %v127
    %vm132 = vcmp.ge.s32.totalorder %v42, %v127
    %vm133 = vcmp.ge.s32.totalorder %v43, %v127
    %vm134 = vcmp.ge.s32.totalorder %v44, %v127
    %vm135 = vcmp.ge.s32.totalorder %v45, %v127
    %s136 = sadd.s32 %s119, %s120
    %v137 = vstv %s136
    %vm138 = vcmp.lt.s32.totalorder %v38, %v137
    %vm139 = vcmp.lt.s32.totalorder %v39, %v137
    %vm140 = vcmp.lt.s32.totalorder %v40, %v137
    %vm141 = vcmp.lt.s32.totalorder %v41, %v137
    %vm142 = vcmp.lt.s32.totalorder %v42, %v137
    %vm143 = vcmp.lt.s32.totalorder %v43, %v137
    %vm144 = vcmp.lt.s32.totalorder %v44, %v137
    %vm145 = vcmp.lt.s32.totalorder %v45, %v137
    %vm146 = vmand %vm128, %vm138
    %vm147 = vmand %vm129, %vm139
    %vm148 = vmand %vm130, %vm140
    %vm149 = vmand %vm131, %vm141
    %vm150 = vmand %vm132, %vm142
    %vm151 = vmand %vm133, %vm143
    %vm152 = vmand %vm134, %vm144
    %vm153 = vmand %vm135, %vm145
    %vm154 = vmor %vm126, %vm146
    %vm155 = vmor %vm126, %vm147
    %vm156 = vmor %vm126, %vm148
    %vm157 = vmor %vm126, %vm149
    %vm158 = vmor %vm126, %vm150
    %vm159 = vmor %vm126, %vm151
    %vm160 = vmor %vm126, %vm152
    %vm161 = vmor %vm126, %vm153
    %s162 = scalar_lea.vmem [#allocation6], 64
    %v163 = vld [vmem:[%s162] sm:$0xff]
    %v164 = vld [vmem:[%s162 + $0x8] sm:$0xff]
    %v165 = vld [vmem:[%s162 + $0x10] sm:$0xff]
    %v166 = vld [vmem:[%s162 + $0x18] sm:$0xff]
    %v167 = vld [vmem:[%s162 + $0x20] sm:$0xff]
    %v168 = vld [vmem:[%s162 + $0x28] sm:$0xff]
    %v169 = vld [vmem:[%s162 + $0x30] sm:$0xff]
    %v170 = vld [vmem:[%s162 + $0x38] sm:$0xff]
    %v171 = vsel %vm154, 0.0, %v163
    %v172 = vsel %vm155, 0.0, %v164
    %v173 = vsel %vm156, 0.0, %v165
    %v174 = vsel %vm157, 0.0, %v166
    %v175 = vsel %vm158, 0.0, %v167
    %v176 = vsel %vm159, 0.0, %v168
    %v177 = vsel %vm160, 0.0, %v169
    %v178 = vsel %vm161, 0.0, %v170
    %s179 = scalar_lea.vmem [#allocation7], 64
    %180 = vst [vmem:[%s179] sm:$0xff] %v171
    %181 = vst [vmem:[%s179 + $0x8] sm:$0xff] %v172
    %182 = vst [vmem:[%s179 + $0x10] sm:$0xff] %v173
    %183 = vst [vmem:[%s179 + $0x18] sm:$0xff] %v174
    %184 = vst [vmem:[%s179 + $0x20] sm:$0xff] %v175
    %185 = vst [vmem:[%s179 + $0x28] sm:$0xff] %v176
    %186 = vst [vmem:[%s179 + $0x30] sm:$0xff] %v177
    %187 = vst [vmem:[%s179 + $0x38] sm:$0xff] %v178
    // Predicated region
    $region18: #{tpu_custom_call.1} parent=1 // pred_check
      _
    $region19: #{tpu_custom_call.1} parent=1 // pred_check_branch
      %189 = sbr.rel (0) target = $region21
    $region20: #{tpu_custom_call.1} parent=1 // pred_region
      %s191 = ssub.s32 2048, 2048
      %192 = vsyncadd [#allocation4], %s191
      %s193 = sshll.u32 [#allocation7], 4
      %s194 = int_to_ptr.vmem [resolvable:$true] %s193
      %199 = dma.vmem_to_hbm [thread:$0]  %s194, 2048, %s2, [#allocation4], 128, 128, 8
    $region21: #{tpu_custom_call.1} parent=1 // pred_fallthru
      _
    // Predicated region
    $region22: #{tpu_custom_call.1} parent=1 // pred_check
      _
    $region23: #{tpu_custom_call.1} parent=1 // pred_check_branch
      %201 = sbr.rel (0) target = $region25
    $region24: #{tpu_custom_call.1} parent=1 // pred_region
      %202 = dma.done [#allocation4], 2048
    $region25: #{tpu_custom_call.1} parent=1 // pred_fallthru
      _
    %203 = vsyncpa [#allocation3], 1
    %204 = vsyncpa [#allocation4], 1
    %205 = vsyncpa [#allocation5], 1

</llo_original>
